<compile_context>
chip_gen: v7x
topology: tpu7x:2x2x1
jax: 0.10.0
libtpu: 0.0.40
codegen_flags: <defaults>
</compile_context>

<pallas_src>
import jax
import jax.numpy as jnp
from jax.experimental import pallas as pl
from jax.experimental.pallas import tpu as pltpu


def _round_up(x, m):
    return pl.cdiv(x, m) * m


def _pick_tb(batch, tb_max):
    """Largest batch tile <= tb_max (multiple of 8); keep >= 2 batch tiles when
    the padded batch is big enough so the 'parallel' axis feeds both v7x TCs."""
    b8 = _round_up(batch, 8)
    if b8 <= 8:
        return int(b8)
    half = _round_up(pl.cdiv(b8, 2), 8)
    return int(min(tb_max, half))


def dlmodel_forward(ids, lens, table, w, b, *, compute_dtype=jnp.bfloat16,
                    tb_max=256, tv=256):
    """Pallas forward pass. compute_dtype is the MXU operand dtype (bf16
    recommended on v6e/v7x; f32 keeps close parity with the f32 reference)."""
    B, L = ids.shape
    V, D = table.shape
    C = w.shape[1]

    # bf16 has an 8-bit mantissa: per-token counts (<= L) stay exact up to 256.
    assert L <= 256 or jnp.dtype(compute_dtype) == jnp.dtype(jnp.float32), (
        "bf16 counts path requires L <= 256")

    tb = _pick_tb(B, tb_max)
    tv = int(min(tv, _round_up(V, 128)))
    B_pad = _round_up(B, tb)
    V_pad = _round_up(V, tv)
    D_pad = _round_up(D, 128)     # lane-dense MXU tiles
    C_pad = _round_up(C, 128)     # lane-dense (unmasked) output stores

    # --- wrapper-side layout plumbing: pad / pre-mask / cast ---
    pos = jnp.arange(L, dtype=jnp.int32)[None, :]
    ids_m = jnp.where(pos < lens.reshape(B, 1).astype(jnp.int32),
                      ids.astype(jnp.int32), -1)          # invalid tokens -> -1
    ids_p = jnp.pad(ids_m, ((0, B_pad - B), (0, 0)), constant_values=-1)
    lens_p = jnp.pad(lens.astype(jnp.int32).reshape(B, 1),
                     ((0, B_pad - B), (0, 0)))
    table_p = jnp.pad(table.astype(jnp.float32),
                      ((0, V_pad - V), (0, D_pad - D))).astype(compute_dtype)
    w_p = jnp.pad(w.astype(jnp.float32),
                  ((0, D_pad - D), (0, C_pad - C))).astype(compute_dtype)
    b_p = jnp.pad(b.astype(jnp.float32), ((0, 0), (0, C_pad - C)))

    nb = B_pad // tb
    nv = V_pad // tv
    # approx reciprocal (EUP) on the low-precision path; exact reciprocal when
    # checking against the f32 reference.
    approx_recip = jnp.dtype(compute_dtype) != jnp.dtype(jnp.float32)

    def kernel(ids_ref, lens_ref, table_ref, w_ref, b_ref, out_ref, pooled_acc):
        k = pl.program_id(1)                      # vocab-tile index (reduction)

        @pl.when(k == 0)
        def _init():
            pooled_acc[...] = jnp.zeros_like(pooled_acc)

        # ids were pre-masked to -1 in the wrapper, so invalid tokens never
        # match any vocab index: no in-kernel sequence mask is needed.
        ids_rel = ids_ref[...] - k * tv           # [tb, L] int32 (O(tb*L) work)
        base_iota = jax.lax.broadcasted_iota(jnp.int32, (tb, tv), 1)

        # Statically unrolled L-loop: live set stays [tb, tv]; no 3-D one-hot
        # cube, no cross-sublane reduction.
        counts = jnp.zeros((tb, tv), jnp.float32)
        for l in range(L):
            counts = counts + (ids_rel[:, l:l + 1] == base_iota).astype(jnp.float32)

        # Pooled-counts matmul on the MXU, accumulated over vocab tiles in f32.
        pooled_acc[...] += jnp.dot(counts.astype(compute_dtype), table_ref[...],
                                   preferred_element_type=jnp.float32)

        @pl.when(k == pl.num_programs(1) - 1)
        def _finalize():
            # Mean pooling: one reciprocal (EUP slot) applied to [tb, D_pad].
            lens_f = jnp.maximum(lens_ref[...].astype(jnp.float32), 1.0)
            inv_len = pl.reciprocal(lens_f, approx=approx_recip)        # [tb, 1]
            pooled = pooled_acc[...] * inv_len
            # Linear classifier head (MXU), lane-dense output store.
            out_ref[...] = jnp.dot(pooled.astype(compute_dtype), w_ref[...],
                                   preferred_element_type=jnp.float32) + b_ref[...]

    # Explicit VMEM budget (v7x: 64 MiB physical, 32 MiB scoped default).
    csz = jnp.dtype(compute_dtype).itemsize
    vmem_need = (2 * (tb * L * 4 + tb * 4)             # ids + lens (double-buffered)
                 + 2 * tv * D_pad * csz                # table tile (double-buffered)
                 + 2 * (D_pad * C_pad * csz + C_pad * 4)  # W, b (constant index)
                 + tb * D_pad * 4                      # pooled accumulator
                 + 2 * tb * C_pad * 4)                 # output tile
    vmem_limit = int(min(64 * 1024 * 1024, max(32 * 1024 * 1024, 2 * vmem_need)))

    grid_spec = pltpu.PrefetchScalarGridSpec(
        num_scalar_prefetch=0,
        grid=(nb, nv),                                 # (batch tiles, vocab tiles)
        in_specs=[
            pl.BlockSpec((tb, L), lambda i, k: (i, 0)),          # ids (pre-masked)
            pl.BlockSpec((tb, 1), lambda i, k: (i, 0)),          # lens
            pl.BlockSpec((tv, D_pad), lambda i, k: (k, 0)),      # table tile (streamed)
            pl.BlockSpec((D_pad, C_pad), lambda i, k: (0, 0)),   # classifier W (resident)
            pl.BlockSpec((1, C_pad), lambda i, k: (0, 0)),       # classifier b (resident)
        ],
        out_specs=pl.BlockSpec((tb, C_pad), lambda i, k: (i, 0)),
        scratch_shapes=[pltpu.VMEM((tb, D_pad), jnp.float32)],   # pooled accumulator
    )

    out_p = pl.pallas_call(
        kernel,
        out_shape=jax.ShapeDtypeStruct((B_pad, C_pad), jnp.float32),
        grid_spec=grid_spec,
        compiler_params=pltpu.CompilerParams(
            # batch axis parallel (dual-TC on v7x), vocab axis is the reduction
            dimension_semantics=("parallel", "arbitrary"),
            vmem_limit_bytes=vmem_limit),
    )(ids_p, lens_p, table_p, w_p, b_p)

    return out_p[:B, :C]


def reference_forward(ids, lens, table, w, b):
    emb = table[ids]                                                    # [B, L, D]
    L = ids.shape[1]
    mask = (jnp.arange(L)[None, :] < lens[:, None]).astype(jnp.float32)
    pooled = jnp.sum(emb * mask[:, :, None], axis=1) / jnp.maximum(
        lens.astype(jnp.float32), 1.0)[:, None]
    return pooled @ w + b


if __name__ == "__main__":
    B, L, V, D, C = 2, 8, 64, 32, 8          # batch, max_len, vocab, emb dim, label_size

    key = jax.random.PRNGKey(0)
    k_ids, k_lens, k_tab, k_w, k_b = jax.random.split(key, 5)

    ids = jax.random.randint(k_ids, (B, L), 0, V, dtype=jnp.int32)
    lens = jax.random.randint(k_lens, (B,), 1, L + 1, dtype=jnp.int32)

    # Deterministic synthetic parameters (no checkpoint loading).
    table = jax.random.normal(k_tab, (V, D), dtype=jnp.float32) * 0.02
    w = jax.random.normal(k_w, (D, C), dtype=jnp.float32) * 0.1
    b = jax.random.normal(k_b, (1, C), dtype=jnp.float32) * 0.01

    ref = reference_forward(ids, lens, table, w, b)

    # f32 MXU path: checks the pooled-counts / L-loop / vocab-tiling rewrite is
    # algebraically equivalent to the reference (summation order may differ).
    logits_f32 = jax.block_until_ready(
        dlmodel_forward(ids, lens, table, w, b, compute_dtype=jnp.float32))
    assert logits_f32.shape == (B, C)
    assert jnp.allclose(logits_f32, ref, atol=1e-4, rtol=1e-4), "f32 mismatch vs reference"

    # bf16 MXU path (recommended on v6e/v7x): counts are exact in bf16 for L <= 256,
    # table/W rounded; approx reciprocal adds ~2^-12 relative error to the mean.
    logits_bf16 = jax.block_until_ready(
        dlmodel_forward(ids, lens, table, w, b, compute_dtype=jnp.bfloat16))
    assert logits_bf16.shape == (B, C)
    assert jnp.allclose(logits_bf16, ref, atol=2e-3, rtol=2e-2), "bf16 mismatch vs reference"

    print("KERNEL_OK")
</pallas_src>

<mosaic_0001>
module attributes {stable_mosaic.version = 11 : i64} {
  func.func @kernel(%arg0: i32, %arg1: i32, %arg2: memref<8x8xi32, #tpu.memory_space<vmem>>, %arg3: memref<8x1xi32, #tpu.memory_space<vmem>>, %arg4: memref<128x128xf32, #tpu.memory_space<vmem>>, %arg5: memref<128x128xf32, #tpu.memory_space<vmem>>, %arg6: memref<1x128xf32, #tpu.memory_space<vmem>>, %arg7: memref<8x128xf32, #tpu.memory_space<vmem>>, %arg8: memref<8x128xf32, #tpu.memory_space<vmem>>) attributes {dimension_semantics = [#tpu.dimension_semantics<parallel>, #tpu.dimension_semantics<arbitrary>], iteration_bounds = array<i64: 1, 1>, scalar_prefetch = 0 : i64, scratch_operands = 1 : i64, tpu.core_type = #tpu.core_type<tc>, window_params = [{transform_indices = @transform_0, window_bounds = array<i64: 8, 8>}, {transform_indices = @transform_1, window_bounds = array<i64: 8, 1>}, {transform_indices = @transform_2, window_bounds = array<i64: 128, 128>}, {pipeline_mode = #tpu.pipeline_mode<synchronous>, transform_indices = @transform_3, window_bounds = array<i64: 128, 128>}, {pipeline_mode = #tpu.pipeline_mode<synchronous>, transform_indices = @transform_4, window_bounds = array<i64: 1, 128>}, {transform_indices = @transform_5, window_bounds = array<i64: 8, 128>}]} {
    %c0_i32 = arith.constant 0 : i32
    %0 = arith.cmpi eq, %arg1, %c0_i32 : i32
    %1 = arith.extui %0 : i1 to i32
    %c0_i32_0 = arith.constant 0 : i32
    %2 = arith.cmpi ne, %1, %c0_i32_0 : i32
    scf.if %2 {
      %cst_11 = arith.constant 0.000000e+00 : f32
      %65 = vector.broadcast %cst_11 : f32 to vector<8x128xf32>
      %c0_12 = arith.constant 0 : index
      %c0_13 = arith.constant 0 : index
      %66 = vector.load %arg8[%c0_12, %c0_13] : memref<8x128xf32, #tpu.memory_space<vmem>>, vector<8x128xf32>
      tpu.vector_store %arg8[%c0_12, %c0_13], %65 {strides = array<i32>} : memref<8x128xf32, #tpu.memory_space<vmem>>, vector<8x128xf32>,
    } else {
    }
    %c0 = arith.constant 0 : index
    %c0_1 = arith.constant 0 : index
    %3 = vector.load %arg2[%c0, %c0_1] : memref<8x8xi32, #tpu.memory_space<vmem>>, vector<8x8xi32>
    %c128_i32 = arith.constant 128 : i32
    %4 = arith.muli %arg1, %c128_i32 : i32
    %5 = vector.broadcast %4 : i32 to vector<8x8xi32>
    %6 = arith.subi %3, %5 : vector<8x8xi32>
    %7 = tpu.iota {dimensions = array<i32: 1>} : vector<8x128xi32>
    %cst = arith.constant 0.000000e+00 : f32
    %8 = vector.broadcast %cst : f32 to vector<8x128xf32>
    %9 = vector.extract_strided_slice %6 {offsets = [0, 0], sizes = [8, 1], strides = [1, 1]} : vector<8x8xi32> to vector<8x1xi32>
    %10 = vector.broadcast %9 : vector<8x1xi32> to vector<8x128xi32>
    %11 = arith.cmpi eq, %10, %7 : vector<8x128xi32>
    %12 = arith.extui %11 : vector<8x128xi1> to vector<8x128xi32>
    %13 = arith.sitofp %12 : vector<8x128xi32> to vector<8x128xf32>
    %14 = arith.addf %8, %13 : vector<8x128xf32>
    %15 = vector.extract_strided_slice %6 {offsets = [0, 1], sizes = [8, 1], strides = [1, 1]} : vector<8x8xi32> to vector<8x1xi32>
    %16 = vector.broadcast %15 : vector<8x1xi32> to vector<8x128xi32>
    %17 = arith.cmpi eq, %16, %7 : vector<8x128xi32>
    %18 = arith.extui %17 : vector<8x128xi1> to vector<8x128xi32>
    %19 = arith.sitofp %18 : vector<8x128xi32> to vector<8x128xf32>
    %20 = arith.addf %14, %19 : vector<8x128xf32>
    %21 = vector.extract_strided_slice %6 {offsets = [0, 2], sizes = [8, 1], strides = [1, 1]} : vector<8x8xi32> to vector<8x1xi32>
    %22 = vector.broadcast %21 : vector<8x1xi32> to vector<8x128xi32>
    %23 = arith.cmpi eq, %22, %7 : vector<8x128xi32>
    %24 = arith.extui %23 : vector<8x128xi1> to vector<8x128xi32>
    %25 = arith.sitofp %24 : vector<8x128xi32> to vector<8x128xf32>
    %26 = arith.addf %20, %25 : vector<8x128xf32>
    %27 = vector.extract_strided_slice %6 {offsets = [0, 3], sizes = [8, 1], strides = [1, 1]} : vector<8x8xi32> to vector<8x1xi32>
    %28 = vector.broadcast %27 : vector<8x1xi32> to vector<8x128xi32>
    %29 = arith.cmpi eq, %28, %7 : vector<8x128xi32>
    %30 = arith.extui %29 : vector<8x128xi1> to vector<8x128xi32>
    %31 = arith.sitofp %30 : vector<8x128xi32> to vector<8x128xf32>
    %32 = arith.addf %26, %31 : vector<8x128xf32>
    %33 = vector.extract_strided_slice %6 {offsets = [0, 4], sizes = [8, 1], strides = [1, 1]} : vector<8x8xi32> to vector<8x1xi32>
    %34 = vector.broadcast %33 : vector<8x1xi32> to vector<8x128xi32>
    %35 = arith.cmpi eq, %34, %7 : vector<8x128xi32>
    %36 = arith.extui %35 : vector<8x128xi1> to vector<8x128xi32>
    %37 = arith.sitofp %36 : vector<8x128xi32> to vector<8x128xf32>
    %38 = arith.addf %32, %37 : vector<8x128xf32>
    %39 = vector.extract_strided_slice %6 {offsets = [0, 5], sizes = [8, 1], strides = [1, 1]} : vector<8x8xi32> to vector<8x1xi32>
    %40 = vector.broadcast %39 : vector<8x1xi32> to vector<8x128xi32>
    %41 = arith.cmpi eq, %40, %7 : vector<8x128xi32>
    %42 = arith.extui %41 : vector<8x128xi1> to vector<8x128xi32>
    %43 = arith.sitofp %42 : vector<8x128xi32> to vector<8x128xf32>
    %44 = arith.addf %38, %43 : vector<8x128xf32>
    %45 = vector.extract_strided_slice %6 {offsets = [0, 6], sizes = [8, 1], strides = [1, 1]} : vector<8x8xi32> to vector<8x1xi32>
    %46 = vector.broadcast %45 : vector<8x1xi32> to vector<8x128xi32>
    %47 = arith.cmpi eq, %46, %7 : vector<8x128xi32>
    %48 = arith.extui %47 : vector<8x128xi1> to vector<8x128xi32>
    %49 = arith.sitofp %48 : vector<8x128xi32> to vector<8x128xf32>
    %50 = arith.addf %44, %49 : vector<8x128xf32>
    %51 = vector.extract_strided_slice %6 {offsets = [0, 7], sizes = [8, 1], strides = [1, 1]} : vector<8x8xi32> to vector<8x1xi32>
    %52 = vector.broadcast %51 : vector<8x1xi32> to vector<8x128xi32>
    %53 = arith.cmpi eq, %52, %7 : vector<8x128xi32>
    %54 = arith.extui %53 : vector<8x128xi1> to vector<8x128xi32>
    %55 = arith.sitofp %54 : vector<8x128xi32> to vector<8x128xf32>
    %56 = arith.addf %50, %55 : vector<8x128xf32>
    %c0_2 = arith.constant 0 : index
    %c0_3 = arith.constant 0 : index
    %57 = vector.load %arg8[%c0_2, %c0_3] : memref<8x128xf32, #tpu.memory_space<vmem>>, vector<8x128xf32>
    %c0_4 = arith.constant 0 : index
    %c0_5 = arith.constant 0 : index
    %58 = vector.load %arg4[%c0_4, %c0_5] : memref<128x128xf32, #tpu.memory_space<vmem>>, vector<128x128xf32>
    %cst_6 = arith.constant dense<0.000000e+00> : vector<8x128xf32>
    %59 = tpu.matmul %56, %58, %cst_6 {dimension_numbers = #tpu.dot_dimension_numbers<[1], [0], [0], [1], [0, 0, 1, 1], [], []>} : vector<8x128xf32>, vector<128x128xf32>, vector<8x128xf32> -> vector<8x128xf32>
    %60 = arith.addf %57, %59 : vector<8x128xf32>
    %c0_7 = arith.constant 0 : index
    %c0_8 = arith.constant 0 : index
    %61 = vector.load %arg8[%c0_7, %c0_8] : memref<8x128xf32, #tpu.memory_space<vmem>>, vector<8x128xf32>
    tpu.vector_store %arg8[%c0_7, %c0_8], %60 {strides = array<i32>} : memref<8x128xf32, #tpu.memory_space<vmem>>, vector<8x128xf32>,
    %c0_i32_9 = arith.constant 0 : i32
    %62 = arith.cmpi eq, %arg1, %c0_i32_9 : i32
    %63 = arith.extui %62 : i1 to i32
    %c0_i32_10 = arith.constant 0 : i32
    %64 = arith.cmpi ne, %63, %c0_i32_10 : i32
    scf.if %64 {
      %c0_11 = arith.constant 0 : index
      %c0_12 = arith.constant 0 : index
      %65 = vector.load %arg3[%c0_11, %c0_12] : memref<8x1xi32, #tpu.memory_space<vmem>>, vector<8x1xi32>
      %66 = arith.sitofp %65 : vector<8x1xi32> to vector<8x1xf32>
      %cst_13 = arith.constant 1.000000e+00 : f32
      %67 = vector.broadcast %cst_13 : f32 to vector<8x1xf32>
      %68 = arith.maximumf %66, %67 : vector<8x1xf32>
      %69 = tpu.reciprocal %68 : vector<8x1xf32> -> vector<8x1xf32>
      %c0_14 = arith.constant 0 : index
      %c0_15 = arith.constant 0 : index
      %70 = vector.load %arg8[%c0_14, %c0_15] : memref<8x128xf32, #tpu.memory_space<vmem>>, vector<8x128xf32>
      %71 = vector.broadcast %69 : vector<8x1xf32> to vector<8x128xf32>
      %72 = arith.mulf %70, %71 : vector<8x128xf32>
      %c0_16 = arith.constant 0 : index
      %c0_17 = arith.constant 0 : index
      %73 = vector.load %arg5[%c0_16, %c0_17] : memref<128x128xf32, #tpu.memory_space<vmem>>, vector<128x128xf32>
      %cst_18 = arith.constant dense<0.000000e+00> : vector<8x128xf32>
      %74 = tpu.matmul %72, %73, %cst_18 {dimension_numbers = #tpu.dot_dimension_numbers<[1], [0], [0], [1], [0, 0, 1, 1], [], []>} : vector<8x128xf32>, vector<128x128xf32>, vector<8x128xf32> -> vector<8x128xf32>
      %c0_19 = arith.constant 0 : index
      %c0_20 = arith.constant 0 : index
      %75 = vector.load %arg6[%c0_19, %c0_20] : memref<1x128xf32, #tpu.memory_space<vmem>>, vector<1x128xf32>
      %76 = vector.broadcast %75 : vector<1x128xf32> to vector<8x128xf32>
      %77 = arith.addf %74, %76 : vector<8x128xf32>
      %c0_21 = arith.constant 0 : index
      %c0_22 = arith.constant 0 : index
      %78 = vector.load %arg7[%c0_21, %c0_22] : memref<8x128xf32, #tpu.memory_space<vmem>>, vector<8x128xf32>
      tpu.vector_store %arg7[%c0_21, %c0_22], %77 {strides = array<i32>} : memref<8x128xf32, #tpu.memory_space<vmem>>, vector<8x128xf32>,
    } else {
    }
    return
  }
  func.func @transform_0(%arg0: i32, %arg1: i32) -> (i32, i32) {
    %c0_i32 = arith.constant 0 : i32
    %c0_i32_0 = arith.constant 0 : i32
    return %arg0, %c0_i32 : i32, i32
  }
  func.func @transform_1(%arg0: i32, %arg1: i32) -> (i32, i32) {
    %c0_i32 = arith.constant 0 : i32
    %c0_i32_0 = arith.constant 0 : i32
    return %arg0, %c0_i32 : i32, i32
  }
  func.func @transform_2(%arg0: i32, %arg1: i32) -> (i32, i32) {
    %c0_i32 = arith.constant 0 : i32
    %c0_i32_0 = arith.constant 0 : i32
    return %arg1, %c0_i32 : i32, i32
  }
  func.func @transform_3(%arg0: i32, %arg1: i32) -> (i32, i32) {
    %c0_i32 = arith.constant 0 : i32
    %c0_i32_0 = arith.constant 0 : i32
    %c0_i32_1 = arith.constant 0 : i32
    return %c0_i32, %c0_i32_0 : i32, i32
  }
  func.func @transform_4(%arg0: i32, %arg1: i32) -> (i32, i32) {
    %c0_i32 = arith.constant 0 : i32
    %c0_i32_0 = arith.constant 0 : i32
    %c0_i32_1 = arith.constant 0 : i32
    return %c0_i32, %c0_i32_0 : i32, i32
  }
  func.func @transform_5(%arg0: i32, %arg1: i32) -> (i32, i32) {
    %c0_i32 = arith.constant 0 : i32
    %c0_i32_0 = arith.constant 0 : i32
    return %arg0, %c0_i32 : i32, i32
  }
}

</mosaic_0001>

<llo_original>
// kernel: tpu_custom_call.1
$region0: #{tpu_custom_call.1}
  #allocation0 [shape = 'u32[]', space=smem, size = 0x4, offset = 0x4, fixed_abs, tag = 'smem constant byte address 0x4 - core index']
  #allocation1 [shape = 'u32[144,128]{1,0:T(1,128)}', space=vmem, size = 0x12000, scoped, tag = 'internal scratch']
  #allocation2 [shape = 'f32[8,128]{1,0:T(8,128)}', space=vmem, size = 0x1000, scoped, tag = 'scratch operand']
  %s0 = inlined_call_operand.vmem [shape: s32[8,8], index: 0, kind: input, shape index: {}]
  %s1 = inlined_call_operand.vmem [shape: s32[8,1], index: 1, kind: input, shape index: {}]
  %s2 = inlined_call_operand.hbm [shape: f32[128,128], index: 2, kind: input, shape index: {}]
  %s3 = inlined_call_operand.hbm [shape: f32[128,128], index: 3, kind: input, shape index: {}]
  %s4 = inlined_call_operand.vmem [shape: f32[1,128], index: 4, kind: input, shape index: {}]
  %s5 = inlined_call_operand.hbm [shape: f32[8,128], index: 5, kind: output, shape index: {}]
  %s6 = sld [smem:[#allocation0]]
  $region46: #{tpu_custom_call.1} parent=0
    _
  %s8 = ssub.s32 1, %s6
  %s9 = scalar_select 0, %s8, %s6
  $region1: #{tpu_custom_call.1} parent=0
    #allocation3 [shape = 'u8[65536]{0}', space=vmem, size = 0x10000, scoped, tag = 'input window, operand 2, single buffered']
    #allocation4 [shape = 's32[1]{0}', space=sflag, size = 0x4, scoped, tag = 'scoped memory for tpu_custom_call.1']
    #allocation5 [shape = 's32[1]{0}', space=sflag, size = 0x4, scoped, tag = 'scoped memory for tpu_custom_call.1']
    #allocation6 [shape = 'u8[65536]{0}', space=vmem, size = 0x10000, scoped, tag = 'input window, operand 3, single buffered']
    #allocation7 [shape = 's32[1]{0}', space=sflag, size = 0x4, scoped, tag = 'scoped memory for tpu_custom_call.1']
    #allocation8 [shape = 'u8[4096]{0}', space=vmem, size = 0x1000, scoped, tag = 'output window, operand 0, single buffered']
    %10 = vsyncpa [#allocation4], 0
    %11 = vsyncpa [#allocation7], 0
    %12 = vsyncpa [#allocation5], 0
    // Predicated region
    $region2: #{tpu_custom_call.1} parent=1 // pred_check
      _
    $region3: #{tpu_custom_call.1} parent=1 // pred_check_branch
      %14 = sbr.rel (0) target = $region5
    $region4: #{tpu_custom_call.1} parent=1 // pred_region
      _
    $region5: #{tpu_custom_call.1} parent=1 // pred_fallthru
      _
    // Predicated region
    $region6: #{tpu_custom_call.1} parent=1 // pred_check
      _
    $region7: #{tpu_custom_call.1} parent=1 // pred_check_branch
      %16 = sbr.rel (0) target = $region9
    $region8: #{tpu_custom_call.1} parent=1 // pred_region
      _
    $region9: #{tpu_custom_call.1} parent=1 // pred_fallthru
      _
    // Predicated region
    $region10: #{tpu_custom_call.1} parent=1 // pred_check
      _
    $region11: #{tpu_custom_call.1} parent=1 // pred_check_branch
      %18 = sbr.rel (0) target = $region13
    $region12: #{tpu_custom_call.1} parent=1 // pred_region
      %s20 = ssub.s32 2048, 2048
      %21 = vsyncadd [#allocation4], %s20
      %s22 = sshll.u32 [#allocation3], 4
      %s23 = int_to_ptr.vmem [resolvable:$true] %s22
      %28 = dma.hbm_to_vmem [thread:$0]  %s2, 2048, %s23, [#allocation4], 128, 128, 8
    $region13: #{tpu_custom_call.1} parent=1 // pred_fallthru
      _
    // Predicated region
    $region14: #{tpu_custom_call.1} parent=1 // pred_check
      _
    $region15: #{tpu_custom_call.1} parent=1 // pred_check_branch
      %30 = sbr.rel (0) target = $region17
    $region16: #{tpu_custom_call.1} parent=1 // pred_region
      %s32 = ssub.s32 2048, 2048
      %33 = vsyncadd [#allocation7], %s32
      %s34 = sshll.u32 [#allocation6], 4
      %s35 = int_to_ptr.vmem [resolvable:$true] %s34
      %40 = dma.hbm_to_vmem [thread:$0]  %s3, 2048, %s35, [#allocation7], 128, 128, 8
    $region17: #{tpu_custom_call.1} parent=1 // pred_fallthru
      _
    // Predicated region
    $region18: #{tpu_custom_call.1} parent=1 // pred_check
      _
    $region19: #{tpu_custom_call.1} parent=1 // pred_check_branch
      %42 = sbr.rel (0) target = $region21
    $region20: #{tpu_custom_call.1} parent=1 // pred_region
      _
    $region21: #{tpu_custom_call.1} parent=1 // pred_fallthru
      _
    // Predicated region
    $region22: #{tpu_custom_call.1} parent=1 // pred_check
      _
    $region23: #{tpu_custom_call.1} parent=1 // pred_check_branch
      %44 = sbr.rel (0) target = $region25
    $region24: #{tpu_custom_call.1} parent=1 // pred_region
      %45 = dma.done [#allocation4], 2048
    $region25: #{tpu_custom_call.1} parent=1 // pred_fallthru
      _
    // Predicated region
    $region26: #{tpu_custom_call.1} parent=1 // pred_check
      _
    $region27: #{tpu_custom_call.1} parent=1 // pred_check_branch
      %47 = sbr.rel (0) target = $region29
    $region28: #{tpu_custom_call.1} parent=1 // pred_region
      %48 = dma.done [#allocation7], 2048
    $region29: #{tpu_custom_call.1} parent=1 // pred_fallthru
      _
    %p49 = scmp.eq.s32.totalorder 0, 0
    // Predicated region
    $region30: #{tpu_custom_call.1} parent=1 // pred_check
      %p50 = pneg %p49
    $region31: #{tpu_custom_call.1} parent=1 // pred_check_branch
      %52 = sbr.rel (%p50) target = $region33
    $region32: #{tpu_custom_call.1} parent=1 // pred_region
      %53 = vst [vmem:[#allocation2] sm:$0xff] 0.0
    $region33: #{tpu_custom_call.1} parent=1 // pred_fallthru
      _
    %v54 = vld [vmem:[%s0] sm:$0xff]
    %s55 = smul.u32 0, 128
    %v56 = vstv %s55
    %v57 = vsub.s32 %v54, %v56
    %v58 = vlaneseq
    %v59 = vand.u32 %v58, 127
    %60 = vset.pattern.permute.xlu0 0
    %61 = vperm.xlu0 %60, %v57
    %v62 = vpop.permute.xlu0 %61
    %vm63 = vcmp.eq.s32.totalorder %v62, %v59
    %v64 = vsel %vm63, 1, 0
    %v65 = vcvt.s32.f32 %v64
    %v66 = vadd.f32 %v65, 0.0
    %67 = vset.pattern.permute.xlu0 1
    %68 = vperm.xlu0 %67, %v57
    %v69 = vpop.permute.xlu0 %68
    %vm70 = vcmp.eq.s32.totalorder %v69, %v59
    %v71 = vsel %vm70, 1, 0
    %v72 = vcvt.s32.f32 %v71
    %v73 = vadd.f32 %v66, %v72
    %74 = vset.pattern.permute.xlu0 2
    %75 = vperm.xlu0 %74, %v57
    %v76 = vpop.permute.xlu0 %75
    %vm77 = vcmp.eq.s32.totalorder %v76, %v59
    %v78 = vsel %vm77, 1, 0
    %v79 = vcvt.s32.f32 %v78
    %v80 = vadd.f32 %v73, %v79
    %81 = vset.pattern.permute.xlu0 3
    %82 = vperm.xlu0 %81, %v57
    %v83 = vpop.permute.xlu0 %82
    %vm84 = vcmp.eq.s32.totalorder %v83, %v59
    %v85 = vsel %vm84, 1, 0
    %v86 = vcvt.s32.f32 %v85
    %v87 = vadd.f32 %v80, %v86
    %88 = vset.pattern.permute.xlu0 4
    %89 = vperm.xlu0 %88, %v57
    %v90 = vpop.permute.xlu0 %89
    %vm91 = vcmp.eq.s32.totalorder %v90, %v59
    %v92 = vsel %vm91, 1, 0
    %v93 = vcvt.s32.f32 %v92
    %v94 = vadd.f32 %v87, %v93
    %95 = vset.pattern.permute.xlu0 5
    %96 = vperm.xlu0 %95, %v57
    %v97 = vpop.permute.xlu0 %96
    %vm98 = vcmp.eq.s32.totalorder %v97, %v59
    %v99 = vsel %vm98, 1, 0
    %v100 = vcvt.s32.f32 %v99
    %v101 = vadd.f32 %v94, %v100
    %102 = vset.pattern.permute.xlu0 6
    %103 = vperm.xlu0 %102, %v57
    %v104 = vpop.permute.xlu0 %103
    %vm105 = vcmp.eq.s32.totalorder %v104, %v59
    %v106 = vsel %vm105, 1, 0
    %v107 = vcvt.s32.f32 %v106
    %v108 = vadd.f32 %v101, %v107
    %109 = vset.pattern.permute.xlu0 7
    %110 = vperm.xlu0 %109, %v57
    %v111 = vpop.permute.xlu0 %110
    %vm112 = vcmp.eq.s32.totalorder %v111, %v59
    %v113 = vsel %vm112, 1, 0
    %v114 = vcvt.s32.f32 %v113
    %v115 = vadd.f32 %v108, %v114
    %v116 = vld [vmem:[#allocation2] sm:$0xff]
    %v117 = vld [vmem:[#allocation3] sm:$0xff]
    %v118 = vld [vmem:[#allocation3 + $0x8] sm:$0xff]
    %v119 = vld [vmem:[#allocation3 + $0x10] sm:$0xff]
    %v120 = vld [vmem:[#allocation3 + $0x18] sm:$0xff]
    %v121 = vld [vmem:[#allocation3 + $0x20] sm:$0xff]
    %v122 = vld [vmem:[#allocation3 + $0x28] sm:$0xff]
    %v123 = vld [vmem:[#allocation3 + $0x30] sm:$0xff]
    %v124 = vld [vmem:[#allocation3 + $0x38] sm:$0xff]
    %v125 = vld [vmem:[#allocation3 + $0x40] sm:$0xff]
    %v126 = vld [vmem:[#allocation3 + $0x48] sm:$0xff]
    %v127 = vld [vmem:[#allocation3 + $0x50] sm:$0xff]
    %v128 = vld [vmem:[#allocation3 + $0x58] sm:$0xff]
    %v129 = vld [vmem:[#allocation3 + $0x60] sm:$0xff]
    %v130 = vld [vmem:[#allocation3 + $0x68] sm:$0xff]
    %v131 = vld [vmem:[#allocation3 + $0x70] sm:$0xff]
    %v132 = vld [vmem:[#allocation3 + $0x78] sm:$0xff]
    %133 = vmatprep.subr.mxu0 0.0
    %134 = vmatpush1.msra.mxu0 %v117
    %135 = vmatprep.subr.mxu0 0.0
    %136 = vmatpush1.msra.mxu0 %v118
    %137 = vmatprep.subr.mxu0 0.0
    %138 = vmatpush1.msra.mxu0 %v119
    %139 = vmatprep.subr.mxu0 0.0
    %140 = vmatpush1.msra.mxu0 %v120
    %141 = vmatprep.subr.mxu0 0.0
    %142 = vmatpush1.msra.mxu0 %v121
    %143 = vmatprep.subr.mxu0 0.0
    %144 = vmatpush1.msra.mxu0 %v122
    %145 = vmatprep.subr.mxu0 0.0
    %146 = vmatpush1.msra.mxu0 %v123
    %147 = vmatprep.subr.mxu0 0.0
    %148 = vmatpush1.msra.mxu0 %v124
    %149 = vmatprep.subr.mxu0 0.0
    %150 = vmatpush1.msra.mxu0 %v125
    %151 = vmatprep.subr.mxu0 0.0
    %152 = vmatpush1.msra.mxu0 %v126
    %153 = vmatprep.subr.mxu0 0.0
    %154 = vmatpush1.msra.mxu0 %v127
    %155 = vmatprep.subr.mxu0 0.0
    %156 = vmatpush1.msra.mxu0 %v128
    %157 = vmatprep.subr.mxu0 0.0
    %158 = vmatpush1.msra.mxu0 %v129
    %159 = vmatprep.subr.mxu0 0.0
    %160 = vmatpush1.msra.mxu0 %v130
    %161 = vmatprep.subr.mxu0 0.0
    %162 = vmatpush1.msra.mxu0 %v131
    %163 = vmatprep.subr.mxu0 0.0
    %164 = vmatpush1.msra.mxu0 %v132
    %165 = vmatprep.subr.mxu0 0.0
    %166 = vmatpush1.msra.mxu0 0.0
    %167 = vmatprep.subr.mxu0 0.0
    %168 = vmatpush1.msra.mxu0 0.0
    %169 = vmatprep.subr.mxu0 0.0
    %170 = vmatpush1.msra.mxu0 0.0
    %171 = vmatprep.subr.mxu0 0.0
    %172 = vmatpush1.msra.mxu0 0.0
    %173 = vmatprep.subr.mxu0 0.0
    %174 = vmatpush1.msra.mxu0 0.0
    %175 = vmatprep.subr.mxu0 0.0
    %176 = vmatpush1.msra.mxu0 0.0
    %177 = vmatprep.subr.mxu0 0.0
    %178 = vmatpush1.msra.mxu0 0.0
    %179 = vmatprep.subr.mxu0 0.0
    %180 = vmatpush1.msra.mxu0 0.0
    %181 = vmatprep.subr.mxu0 0.0
    %182 = vmatpush1.msra.mxu0 0.0
    %183 = vmatprep.subr.mxu0 0.0
    %184 = vmatpush1.msra.mxu0 0.0
    %185 = vmatprep.subr.mxu0 0.0
    %186 = vmatpush1.msra.mxu0 0.0
    %187 = vmatprep.subr.mxu0 0.0
    %188 = vmatpush1.msra.mxu0 0.0
    %189 = vmatprep.subr.mxu0 0.0
    %190 = vmatpush1.msra.mxu0 0.0
    %191 = vmatprep.subr.mxu0 0.0
    %192 = vmatpush1.msra.mxu0 0.0
    %193 = vmatprep.subr.mxu0 0.0
    %194 = vmatpush1.msra.mxu0 0.0
    %195 = vmatprep.subr.mxu0 0.0
    %196 = vmatpush1.msra.mxu0 0.0
    %197 = vmatprep.mubr.f32.mxu0 0.0
    %198 = vmatmul.mubr.f32.gmra.mrb[0].mxu0 %v115
    %v199 = vpop.f32.mrb[0].mxu0
    %v200 = vadd.f32 0.0, %v199
    %v201 = vpop.f32.mrb[0].mxu0
    %202 = vdwg.mxu0
    %v203 = vadd.f32 %v116, %v200
    %204 = vst [vmem:[#allocation2] sm:$0xff] %v203
    // Predicated region
    $region34: #{tpu_custom_call.1} parent=1 // pred_check
      %p205 = pneg %p49
    $region35: #{tpu_custom_call.1} parent=1 // pred_check_branch
      %207 = sbr.rel (%p205) target = $region37
    $region36: #{tpu_custom_call.1} parent=1 // pred_region
      %v208 = vld [vmem:[%s1] sm:$0xff]
      %v209 = vcvt.s32.f32 %v208
      %v210 = vmax.f32 %v209, 1.0
      %v211 = vrcp.pop %v210
      %v212 = vld [vmem:[#allocation2] sm:$0xff]
      %214 = vset.pattern.permute.xlu0 0
      %215 = vperm.xlu0 %214, %v211
      %v216 = vpop.permute.xlu0 %215
      %v218 = vmul.f32 %v212, %v216
      %v219 = vld [vmem:[#allocation6] sm:$0xff]
      %v220 = vld [vmem:[#allocation6 + $0x8] sm:$0xff]
      %v221 = vld [vmem:[#allocation6 + $0x10] sm:$0xff]
      %v222 = vld [vmem:[#allocation6 + $0x18] sm:$0xff]
      %v223 = vld [vmem:[#allocation6 + $0x20] sm:$0xff]
      %v224 = vld [vmem:[#allocation6 + $0x28] sm:$0xff]
      %v225 = vld [vmem:[#allocation6 + $0x30] sm:$0xff]
      %v226 = vld [vmem:[#allocation6 + $0x38] sm:$0xff]
      %v227 = vld [vmem:[#allocation6 + $0x40] sm:$0xff]
      %v228 = vld [vmem:[#allocation6 + $0x48] sm:$0xff]
      %v229 = vld [vmem:[#allocation6 + $0x50] sm:$0xff]
      %v230 = vld [vmem:[#allocation6 + $0x58] sm:$0xff]
      %v231 = vld [vmem:[#allocation6 + $0x60] sm:$0xff]
      %v232 = vld [vmem:[#allocation6 + $0x68] sm:$0xff]
      %v233 = vld [vmem:[#allocation6 + $0x70] sm:$0xff]
      %v234 = vld [vmem:[#allocation6 + $0x78] sm:$0xff]
      %v235 = vld [vmem:[%s4] sm:$0x1]
      %v237 = vlaneseq
      %v238 = vshrl.u32 %v237, 7
      %v239 = vsub.s32 0, %v238
      %v240 = vrot.slane %v235, %v239
      %242 = vmatprep.subr.mxu0 0.0
      %243 = vmatpush1.msra.mxu0 %v219
      %244 = vmatprep.subr.mxu0 0.0
      %245 = vmatpush1.msra.mxu0 %v220
      %246 = vmatprep.subr.mxu0 0.0
      %247 = vmatpush1.msra.mxu0 %v221
      %248 = vmatprep.subr.mxu0 0.0
      %249 = vmatpush1.msra.mxu0 %v222
      %250 = vmatprep.subr.mxu0 0.0
      %251 = vmatpush1.msra.mxu0 %v223
      %252 = vmatprep.subr.mxu0 0.0
      %253 = vmatpush1.msra.mxu0 %v224
      %254 = vmatprep.subr.mxu0 0.0
      %255 = vmatpush1.msra.mxu0 %v225
      %256 = vmatprep.subr.mxu0 0.0
      %257 = vmatpush1.msra.mxu0 %v226
      %258 = vmatprep.subr.mxu0 0.0
      %259 = vmatpush1.msra.mxu0 %v227
      %260 = vmatprep.subr.mxu0 0.0
      %261 = vmatpush1.msra.mxu0 %v228
      %262 = vmatprep.subr.mxu0 0.0
      %263 = vmatpush1.msra.mxu0 %v229
      %264 = vmatprep.subr.mxu0 0.0
      %265 = vmatpush1.msra.mxu0 %v230
      %266 = vmatprep.subr.mxu0 0.0
      %267 = vmatpush1.msra.mxu0 %v231
      %268 = vmatprep.subr.mxu0 0.0
      %269 = vmatpush1.msra.mxu0 %v232
      %270 = vmatprep.subr.mxu0 0.0
      %271 = vmatpush1.msra.mxu0 %v233
      %272 = vmatprep.subr.mxu0 0.0
      %273 = vmatpush1.msra.mxu0 %v234
      %274 = vmatprep.subr.mxu0 0.0
      %275 = vmatpush1.msra.mxu0 0.0
      %276 = vmatprep.subr.mxu0 0.0
      %277 = vmatpush1.msra.mxu0 0.0
      %278 = vmatprep.subr.mxu0 0.0
      %279 = vmatpush1.msra.mxu0 0.0
      %280 = vmatprep.subr.mxu0 0.0
      %281 = vmatpush1.msra.mxu0 0.0
      %282 = vmatprep.subr.mxu0 0.0
      %283 = vmatpush1.msra.mxu0 0.0
      %284 = vmatprep.subr.mxu0 0.0
      %285 = vmatpush1.msra.mxu0 0.0
      %286 = vmatprep.subr.mxu0 0.0
      %287 = vmatpush1.msra.mxu0 0.0
      %288 = vmatprep.subr.mxu0 0.0
      %289 = vmatpush1.msra.mxu0 0.0
      %290 = vmatprep.subr.mxu0 0.0
      %291 = vmatpush1.msra.mxu0 0.0
      %292 = vmatprep.subr.mxu0 0.0
      %293 = vmatpush1.msra.mxu0 0.0
      %294 = vmatprep.subr.mxu0 0.0
      %295 = vmatpush1.msra.mxu0 0.0
      %296 = vmatprep.subr.mxu0 0.0
      %297 = vmatpush1.msra.mxu0 0.0
      %298 = vmatprep.subr.mxu0 0.0
      %299 = vmatpush1.msra.mxu0 0.0
      %300 = vmatprep.subr.mxu0 0.0
      %301 = vmatpush1.msra.mxu0 0.0
      %302 = vmatprep.subr.mxu0 0.0
      %303 = vmatpush1.msra.mxu0 0.0
      %304 = vmatprep.subr.mxu0 0.0
      %305 = vmatpush1.msra.mxu0 0.0
      %306 = vmatprep.mubr.f32.mxu0 0.0
      %307 = vmatmul.mubr.f32.gmra.mrb[0].mxu0 %v218
      %v308 = vpop.f32.mrb[0].mxu0
      %v309 = vadd.f32 %v240, %v308
      %v310 = vpop.f32.mrb[0].mxu0
      %311 = vdwg.mxu0
      %312 = vst [vmem:[#allocation8] sm:$0xff] %v309
    $region37: #{tpu_custom_call.1} parent=1 // pred_fallthru
      _
    // Predicated region
    $region38: #{tpu_custom_call.1} parent=1 // pred_check
      _
    $region39: #{tpu_custom_call.1} parent=1 // pred_check_branch
      %314 = sbr.rel (0) target = $region41
    $region40: #{tpu_custom_call.1} parent=1 // pred_region
      %s316 = ssub.s32 128, 128
      %317 = vsyncadd [#allocation5], %s316
      %s319 = sshll.u32 [#allocation8], 4
      %s320 = int_to_ptr.vmem [resolvable:$true] %s319
      %322 = dma.vmem_to_hbm [thread:$0]  %s320, 128, %s5, [#allocation5]
    $region41: #{tpu_custom_call.1} parent=1 // pred_fallthru
      _
    // Predicated region
    $region42: #{tpu_custom_call.1} parent=1 // pred_check
      _
    $region43: #{tpu_custom_call.1} parent=1 // pred_check_branch
      %324 = sbr.rel (0) target = $region45
    $region44: #{tpu_custom_call.1} parent=1 // pred_region
      %325 = dma.done [#allocation5], 128
    $region45: #{tpu_custom_call.1} parent=1 // pred_fallthru
      _
    %326 = vsyncpa [#allocation4], 1
    %327 = vsyncpa [#allocation7], 1
    %328 = vsyncpa [#allocation5], 1

</llo_original>
